<compile_context>
chip_gen: v7x
topology: tpu7x:2x2x1
jax: 0.10.0
libtpu: 0.0.40
codegen_flags: <defaults>
</compile_context>

<pallas_src>
import functools

import jax
import jax.numpy as jnp
from jax.experimental import pallas as pl
from jax.experimental.pallas import tpu as pltpu


# ------------------------------ math helpers -------------------------------

def _gelu_tanh(x):
    # matches torch.nn.functional.gelu(..., approximate='tanh')
    c = 0.7978845608028654  # sqrt(2/pi)
    return 0.5 * x * (1.0 + jnp.tanh(c * (x + 0.044715 * x * x * x)))


# -------------------------------- the kernel --------------------------------

def _mlp_kernel(compute_dtype, x_ref, w1_ref, b1_ref, w2_ref, b2_ref, o_ref):
    x = x_ref[...].astype(compute_dtype)                       # (tm, Dp)
    h = jnp.dot(x, w1_ref[...], preferred_element_type=jnp.float32)
    h = _gelu_tanh(h + b1_ref[...])                            # f32 elementwise
    y = jnp.dot(h.astype(compute_dtype), w2_ref[...],
                preferred_element_type=jnp.float32) + b2_ref[...]
    o_ref[...] = y.astype(o_ref.dtype)                         # lane-dense store


# --------------------------------- wrapper -----------------------------------

def _largest_aligned_divisor(n, align, cap):
    best = None
    t = align
    limit = min(n, cap)
    while t <= limit:
        if n % t == 0:
            best = t
        t += align
    return best


def mlp_forward(x, params, *, compute_dtype=jnp.float32, max_rows_per_tile=1024):
    """Applies the MLP row-wise over the last axis of x (shape (..., D))."""
    orig_shape = x.shape
    D = orig_shape[-1]
    rows = 1
    for s in orig_shape[:-1]:
        rows *= s

    w1, b1 = params["w1"], params["b1"]        # (D, I), (1, I)
    w2, b2 = params["w2"], params["b2"]        # (I, D), (1, D)
    inter = w1.shape[1]

    # ---- lane-dense row packing: pack p rows so the feature axis fills 128 lanes
    pack = 1
    if D < 128 and 128 % D == 0:
        pack = 128 // D
        if rows % pack != 0:
            pack = 1
    if pack > 1:
        eye = jnp.eye(pack, dtype=w1.dtype)
        w1 = jnp.kron(eye, w1)                 # block-diag (pack*D, pack*I)
        w2 = jnp.kron(eye, w2)                 # block-diag (pack*I, pack*D)
        b1 = jnp.tile(b1, (1, pack))
        b2 = jnp.tile(b2, (1, pack))
    Dp, Ip = D * pack, inter * pack
    rows_p = rows // pack

    x2 = x.reshape(rows_p, Dp)
    w1 = w1.astype(compute_dtype)
    w2 = w2.astype(compute_dtype)
    b1 = b1.astype(jnp.float32)
    b2 = b2.astype(jnp.float32)

    # Biggest row tile that keeps (8, 128)-aligned blocks; fall back to whole array.
    tm = _largest_aligned_divisor(rows_p, 8, max_rows_per_tile)
    if tm is None:
        tm = rows_p                            # block == full array dims (legal)
    grid = (rows_p // tm,)

    kernel = functools.partial(_mlp_kernel, compute_dtype)
    out = pl.pallas_call(
        kernel,
        out_shape=jax.ShapeDtypeStruct((rows_p, Dp), x.dtype),
        grid_spec=pltpu.PrefetchScalarGridSpec(
            num_scalar_prefetch=0,
            grid=grid,
            in_specs=[
                pl.BlockSpec((tm, Dp), lambda i: (i, 0)),     # row tile of x
                pl.BlockSpec((Dp, Ip), lambda i: (0, 0)),     # resident W1
                pl.BlockSpec((1, Ip), lambda i: (0, 0)),      # resident b1
                pl.BlockSpec((Ip, Dp), lambda i: (0, 0)),     # resident W2
                pl.BlockSpec((1, Dp), lambda i: (0, 0)),      # resident b2
            ],
            out_specs=pl.BlockSpec((tm, Dp), lambda i: (i, 0)),
        ),
        compiler_params=pltpu.CompilerParams(
            dimension_semantics=("parallel",)),               # rows independent
    )(x2, w1, b1, w2, b2)
    return out.reshape(orig_shape)


# ---------------------------- parameter construction -------------------------

def init_params(key, *, dim, inter, dtype=jnp.float32):
    """nn.Linear weights are (out, in); transpose to (in, out) so x @ W + b."""
    k1, k2, k3, k4 = jax.random.split(key, 4)
    w1_pt = (0.02 * jax.random.normal(k1, (inter, dim))).astype(dtype)
    b1_pt = (0.02 * jax.random.normal(k2, (inter,))).astype(dtype)
    w2_pt = (0.02 * jax.random.normal(k3, (dim, inter))).astype(dtype)
    b2_pt = (0.02 * jax.random.normal(k4, (dim,))).astype(dtype)
    return {
        "w1": w1_pt.T, "b1": b1_pt.reshape(1, inter),
        "w2": w2_pt.T, "b2": b2_pt.reshape(1, dim),
    }


# ---------------------------- pure-JAX reference ------------------------------

def reference(x, params):
    h = x.astype(jnp.float32) @ params["w1"] + params["b1"]
    h = _gelu_tanh(h)
    return h @ params["w2"] + params["b2"]


# ------------------------------------ main ------------------------------------

if __name__ == "__main__":
    B, S, D = 2, 16, 64          # batch, num patches, projection_dim
    INTER = 128                  # intermediate_size (config default)

    key = jax.random.PRNGKey(0)
    kx, kp = jax.random.split(key)
    x = jax.random.normal(kx, (B, S, D), dtype=jnp.float32)
    params = init_params(kp, dim=D, inter=INTER)

    ref = reference(x, params)

    # f32 MXU operands: tight check against the f32 reference.
    out_f32 = jax.block_until_ready(mlp_forward(x, params))
    if not jnp.allclose(out_f32, ref, rtol=1e-4, atol=1e-4):
        raise AssertionError("f32 Pallas MLP output mismatch vs JAX reference")

    # bf16 MXU operands (f32 accumulation): looser tolerance, per perf review.
    out_bf16 = jax.block_until_ready(
        mlp_forward(x, params, compute_dtype=jnp.bfloat16))
    if not jnp.allclose(out_bf16, ref, rtol=2e-2, atol=1e-2):
        raise AssertionError("bf16 Pallas MLP output mismatch vs JAX reference")

    print("KERNEL_OK")
</pallas_src>

<mosaic_0001>
module attributes {stable_mosaic.version = 11 : i64} {
  func.func @_mlp_kernel(%arg0: i32, %arg1: memref<16x128xf32, #tpu.memory_space<vmem>>, %arg2: memref<128x256xf32, #tpu.memory_space<vmem>>, %arg3: memref<1x256xf32, #tpu.memory_space<vmem>>, %arg4: memref<256x128xf32, #tpu.memory_space<vmem>>, %arg5: memref<1x128xf32, #tpu.memory_space<vmem>>, %arg6: memref<16x128xf32, #tpu.memory_space<vmem>>) attributes {dimension_semantics = [#tpu.dimension_semantics<parallel>], iteration_bounds = array<i64: 1>, scalar_prefetch = 0 : i64, scratch_operands = 0 : i64, tpu.core_type = #tpu.core_type<tc>, window_params = [{transform_indices = @transform_0, window_bounds = array<i64: 16, 128>}, {pipeline_mode = #tpu.pipeline_mode<synchronous>, transform_indices = @transform_1, window_bounds = array<i64: 128, 256>}, {pipeline_mode = #tpu.pipeline_mode<synchronous>, transform_indices = @transform_2, window_bounds = array<i64: 1, 256>}, {pipeline_mode = #tpu.pipeline_mode<synchronous>, transform_indices = @transform_3, window_bounds = array<i64: 256, 128>}, {pipeline_mode = #tpu.pipeline_mode<synchronous>, transform_indices = @transform_4, window_bounds = array<i64: 1, 128>}, {transform_indices = @transform_5, window_bounds = array<i64: 16, 128>}]} {
    %c0 = arith.constant 0 : index
    %c0_0 = arith.constant 0 : index
    %0 = vector.load %arg1[%c0, %c0_0] : memref<16x128xf32, #tpu.memory_space<vmem>>, vector<16x128xf32>
    %c0_1 = arith.constant 0 : index
    %c0_2 = arith.constant 0 : index
    %1 = vector.load %arg2[%c0_1, %c0_2] : memref<128x256xf32, #tpu.memory_space<vmem>>, vector<128x256xf32>
    %cst = arith.constant dense<0.000000e+00> : vector<16x256xf32>
    %2 = tpu.matmul %0, %1, %cst {dimension_numbers = #tpu.dot_dimension_numbers<[1], [0], [0], [1], [0, 0, 1, 1], [], []>} : vector<16x128xf32>, vector<128x256xf32>, vector<16x256xf32> -> vector<16x256xf32>
    %c0_3 = arith.constant 0 : index
    %c0_4 = arith.constant 0 : index
    %3 = vector.load %arg3[%c0_3, %c0_4] : memref<1x256xf32, #tpu.memory_space<vmem>>, vector<1x256xf32>
    %4 = vector.broadcast %3 : vector<1x256xf32> to vector<16x256xf32>
    %5 = arith.addf %2, %4 : vector<16x256xf32>
    %cst_5 = arith.constant 5.000000e-01 : f32
    %6 = vector.broadcast %cst_5 : f32 to vector<16x256xf32>
    %7 = arith.mulf %6, %5 : vector<16x256xf32>
    %cst_6 = arith.constant 4.471500e-02 : f32
    %8 = vector.broadcast %cst_6 : f32 to vector<16x256xf32>
    %9 = arith.mulf %8, %5 : vector<16x256xf32>
    %10 = arith.mulf %9, %5 : vector<16x256xf32>
    %11 = arith.mulf %10, %5 : vector<16x256xf32>
    %12 = arith.addf %5, %11 : vector<16x256xf32>
    %cst_7 = arith.constant 0.797884583 : f32
    %13 = vector.broadcast %cst_7 : f32 to vector<16x256xf32>
    %14 = arith.mulf %13, %12 : vector<16x256xf32>
    %15 = math.tanh %14 : vector<16x256xf32>
    %cst_8 = arith.constant 1.000000e+00 : f32
    %16 = vector.broadcast %cst_8 : f32 to vector<16x256xf32>
    %17 = arith.addf %16, %15 : vector<16x256xf32>
    %18 = arith.mulf %7, %17 : vector<16x256xf32>
    %c0_9 = arith.constant 0 : index
    %c0_10 = arith.constant 0 : index
    %19 = vector.load %arg4[%c0_9, %c0_10] : memref<256x128xf32, #tpu.memory_space<vmem>>, vector<256x128xf32>
    %cst_11 = arith.constant dense<0.000000e+00> : vector<16x128xf32>
    %20 = tpu.matmul %18, %19, %cst_11 {dimension_numbers = #tpu.dot_dimension_numbers<[1], [0], [0], [1], [0, 0, 1, 1], [], []>} : vector<16x256xf32>, vector<256x128xf32>, vector<16x128xf32> -> vector<16x128xf32>
    %c0_12 = arith.constant 0 : index
    %c0_13 = arith.constant 0 : index
    %21 = vector.load %arg5[%c0_12, %c0_13] : memref<1x128xf32, #tpu.memory_space<vmem>>, vector<1x128xf32>
    %22 = vector.broadcast %21 : vector<1x128xf32> to vector<16x128xf32>
    %23 = arith.addf %20, %22 : vector<16x128xf32>
    %c0_14 = arith.constant 0 : index
    %c0_15 = arith.constant 0 : index
    %24 = vector.load %arg6[%c0_14, %c0_15] : memref<16x128xf32, #tpu.memory_space<vmem>>, vector<16x128xf32>
    tpu.vector_store %arg6[%c0_14, %c0_15], %23 {strides = array<i32>} : memref<16x128xf32, #tpu.memory_space<vmem>>, vector<16x128xf32>,
    return
  }
  func.func @transform_0(%arg0: i32) -> (i32, i32) {
    %c0_i32 = arith.constant 0 : i32
    %c0_i32_0 = arith.constant 0 : i32
    return %arg0, %c0_i32 : i32, i32
  }
  func.func @transform_1(%arg0: i32) -> (i32, i32) {
    %c0_i32 = arith.constant 0 : i32
    %c0_i32_0 = arith.constant 0 : i32
    %c0_i32_1 = arith.constant 0 : i32
    return %c0_i32, %c0_i32_0 : i32, i32
  }
  func.func @transform_2(%arg0: i32) -> (i32, i32) {
    %c0_i32 = arith.constant 0 : i32
    %c0_i32_0 = arith.constant 0 : i32
    %c0_i32_1 = arith.constant 0 : i32
    return %c0_i32, %c0_i32_0 : i32, i32
  }
  func.func @transform_3(%arg0: i32) -> (i32, i32) {
    %c0_i32 = arith.constant 0 : i32
    %c0_i32_0 = arith.constant 0 : i32
    %c0_i32_1 = arith.constant 0 : i32
    return %c0_i32, %c0_i32_0 : i32, i32
  }
  func.func @transform_4(%arg0: i32) -> (i32, i32) {
    %c0_i32 = arith.constant 0 : i32
    %c0_i32_0 = arith.constant 0 : i32
    %c0_i32_1 = arith.constant 0 : i32
    return %c0_i32, %c0_i32_0 : i32, i32
  }
  func.func @transform_5(%arg0: i32) -> (i32, i32) {
    %c0_i32 = arith.constant 0 : i32
    %c0_i32_0 = arith.constant 0 : i32
    return %arg0, %c0_i32 : i32, i32
  }
}

</mosaic_0001>

<llo_original>
// kernel: tpu_custom_call.1
$region0: #{tpu_custom_call.1}
  #allocation0 [shape = 'u32[]', space=smem, size = 0x4, offset = 0x4, fixed_abs, tag = 'smem constant byte address 0x4 - core index']
  #allocation1 [shape = 'u32[144,128]{1,0:T(1,128)}', space=vmem, size = 0x12000, scoped, tag = 'internal scratch']
  %s0 = inlined_call_operand.hbm [shape: f32[16,128], index: 0, kind: input, shape index: {}]
  %s1 = inlined_call_operand.hbm [shape: f32[128,256], index: 1, kind: input, shape index: {}]
  %s2 = inlined_call_operand.vmem [shape: f32[1,256], index: 2, kind: input, shape index: {}]
  %s3 = inlined_call_operand.hbm [shape: f32[256,128], index: 3, kind: input, shape index: {}]
  %s4 = inlined_call_operand.vmem [shape: f32[1,128], index: 4, kind: input, shape index: {}]
  %s5 = inlined_call_operand.hbm [shape: f32[16,128], index: 5, kind: output, shape index: {}]
  %s6 = sld [smem:[#allocation0]]
  $region42: #{tpu_custom_call.1} parent=0
    _
  %s8 = ssub.s32 1, %s6
  %s9 = scalar_select 0, %s8, %s6
  $region1: #{tpu_custom_call.1} parent=0
    #allocation2 [shape = 'u8[8192]{0}', space=vmem, size = 0x2000, scoped, tag = 'input window, operand 0, single buffered']
    #allocation3 [shape = 's32[1]{0}', space=sflag, size = 0x4, scoped, tag = 'scoped memory for tpu_custom_call.1']
    #allocation4 [shape = 's32[1]{0}', space=sflag, size = 0x4, scoped, tag = 'scoped memory for tpu_custom_call.1']
    #allocation5 [shape = 'u8[131072]{0}', space=vmem, size = 0x20000, scoped, tag = 'input window, operand 1, single buffered']
    #allocation6 [shape = 's32[1]{0}', space=sflag, size = 0x4, scoped, tag = 'scoped memory for tpu_custom_call.1']
    #allocation7 [shape = 'u8[131072]{0}', space=vmem, size = 0x20000, scoped, tag = 'input window, operand 3, single buffered']
    #allocation8 [shape = 'u8[8192]{0}', space=vmem, size = 0x2000, scoped, tag = 'output window, operand 0, single buffered']
    %10 = vsyncpa [#allocation3], 0
    %11 = vsyncpa [#allocation6], 0
    %12 = vsyncpa [#allocation4], 0
    // Predicated region
    $region2: #{tpu_custom_call.1} parent=1 // pred_check
      _
    $region3: #{tpu_custom_call.1} parent=1 // pred_check_branch
      %14 = sbr.rel (0) target = $region5
    $region4: #{tpu_custom_call.1} parent=1 // pred_region
      %s16 = ssub.s32 256, 256
      %17 = vsyncadd [#allocation3], %s16
      %s18 = sshll.u32 [#allocation2], 4
      %s19 = int_to_ptr.vmem [resolvable:$true] %s18
      %24 = dma.hbm_to_vmem [thread:$0]  %s0, 256, %s19, [#allocation3], 128, 128, 8
    $region5: #{tpu_custom_call.1} parent=1 // pred_fallthru
      _
    // Predicated region
    $region6: #{tpu_custom_call.1} parent=1 // pred_check
      _
    $region7: #{tpu_custom_call.1} parent=1 // pred_check_branch
      %26 = sbr.rel (0) target = $region9
    $region8: #{tpu_custom_call.1} parent=1 // pred_region
      %s28 = ssub.s32 4096, 4096
      %29 = vsyncadd [#allocation6], %s28
      %s30 = sshll.u32 [#allocation5], 4
      %s31 = int_to_ptr.vmem [resolvable:$true] %s30
      %36 = dma.hbm_to_vmem [thread:$0]  %s1, 4096, %s31, [#allocation6], 256, 256, 16
    $region9: #{tpu_custom_call.1} parent=1 // pred_fallthru
      _
    // Predicated region
    $region10: #{tpu_custom_call.1} parent=1 // pred_check
      _
    $region11: #{tpu_custom_call.1} parent=1 // pred_check_branch
      %38 = sbr.rel (0) target = $region13
    $region12: #{tpu_custom_call.1} parent=1 // pred_region
      _
    $region13: #{tpu_custom_call.1} parent=1 // pred_fallthru
      _
    // Predicated region
    $region14: #{tpu_custom_call.1} parent=1 // pred_check
      _
    $region15: #{tpu_custom_call.1} parent=1 // pred_check_branch
      %40 = sbr.rel (0) target = $region17
    $region16: #{tpu_custom_call.1} parent=1 // pred_region
      %s42 = ssub.s32 4096, 4096
      %43 = vsyncadd [#allocation6], %s42
      %s44 = sshll.u32 [#allocation7], 4
      %s45 = int_to_ptr.vmem [resolvable:$true] %s44
      %50 = dma.hbm_to_vmem [thread:$0]  %s3, 4096, %s45, [#allocation6], 128, 128, 8
    $region17: #{tpu_custom_call.1} parent=1 // pred_fallthru
      _
    // Predicated region
    $region18: #{tpu_custom_call.1} parent=1 // pred_check
      _
    $region19: #{tpu_custom_call.1} parent=1 // pred_check_branch
      %52 = sbr.rel (0) target = $region21
    $region20: #{tpu_custom_call.1} parent=1 // pred_region
      _
    $region21: #{tpu_custom_call.1} parent=1 // pred_fallthru
      _
    // Predicated region
    $region22: #{tpu_custom_call.1} parent=1 // pred_check
      _
    $region23: #{tpu_custom_call.1} parent=1 // pred_check_branch
      %54 = sbr.rel (0) target = $region25
    $region24: #{tpu_custom_call.1} parent=1 // pred_region
      %55 = dma.done [#allocation3], 256
    $region25: #{tpu_custom_call.1} parent=1 // pred_fallthru
      _
    // Predicated region
    $region26: #{tpu_custom_call.1} parent=1 // pred_check
      _
    $region27: #{tpu_custom_call.1} parent=1 // pred_check_branch
      %57 = sbr.rel (0) target = $region29
    $region28: #{tpu_custom_call.1} parent=1 // pred_region
      %58 = dma.done [#allocation6], 4096
    $region29: #{tpu_custom_call.1} parent=1 // pred_fallthru
      _
    // Predicated region
    $region30: #{tpu_custom_call.1} parent=1 // pred_check
      _
    $region31: #{tpu_custom_call.1} parent=1 // pred_check_branch
      %60 = sbr.rel (0) target = $region33
    $region32: #{tpu_custom_call.1} parent=1 // pred_region
      %61 = dma.done [#allocation6], 4096
    $region33: #{tpu_custom_call.1} parent=1 // pred_fallthru
      _
    %v62 = vld [vmem:[#allocation2] sm:$0xff]
    %v63 = vld [vmem:[#allocation2 + $0x8] sm:$0xff]
    %v64 = vld [vmem:[#allocation5] sm:$0xff]
    %v65 = vld [vmem:[#allocation5 + $0x8] sm:$0xff]
    %v66 = vld [vmem:[#allocation5 + $0x10] sm:$0xff]
    %v67 = vld [vmem:[#allocation5 + $0x18] sm:$0xff]
    %v68 = vld [vmem:[#allocation5 + $0x20] sm:$0xff]
    %v69 = vld [vmem:[#allocation5 + $0x28] sm:$0xff]
    %v70 = vld [vmem:[#allocation5 + $0x30] sm:$0xff]
    %v71 = vld [vmem:[#allocation5 + $0x38] sm:$0xff]
    %v72 = vld [vmem:[#allocation5 + $0x40] sm:$0xff]
    %v73 = vld [vmem:[#allocation5 + $0x48] sm:$0xff]
    %v74 = vld [vmem:[#allocation5 + $0x50] sm:$0xff]
    %v75 = vld [vmem:[#allocation5 + $0x58] sm:$0xff]
    %v76 = vld [vmem:[#allocation5 + $0x60] sm:$0xff]
    %v77 = vld [vmem:[#allocation5 + $0x68] sm:$0xff]
    %v78 = vld [vmem:[#allocation5 + $0x70] sm:$0xff]
    %v79 = vld [vmem:[#allocation5 + $0x78] sm:$0xff]
    %v80 = vld [vmem:[#allocation5 + $0x80] sm:$0xff]
    %v81 = vld [vmem:[#allocation5 + $0x88] sm:$0xff]
    %v82 = vld [vmem:[#allocation5 + $0x90] sm:$0xff]
    %v83 = vld [vmem:[#allocation5 + $0x98] sm:$0xff]
    %v84 = vld [vmem:[#allocation5 + $0xa0] sm:$0xff]
    %v85 = vld [vmem:[#allocation5 + $0xa8] sm:$0xff]
    %v86 = vld [vmem:[#allocation5 + $0xb0] sm:$0xff]
    %v87 = vld [vmem:[#allocation5 + $0xb8] sm:$0xff]
    %v88 = vld [vmem:[#allocation5 + $0xc0] sm:$0xff]
    %v89 = vld [vmem:[#allocation5 + $0xc8] sm:$0xff]
    %v90 = vld [vmem:[#allocation5 + $0xd0] sm:$0xff]
    %v91 = vld [vmem:[#allocation5 + $0xd8] sm:$0xff]
    %v92 = vld [vmem:[#allocation5 + $0xe0] sm:$0xff]
    %v93 = vld [vmem:[#allocation5 + $0xe8] sm:$0xff]
    %v94 = vld [vmem:[#allocation5 + $0xf0] sm:$0xff]
    %v95 = vld [vmem:[#allocation5 + $0xf8] sm:$0xff]
    %v96 = vld [vmem:[%s2] sm:$0x3]
    %v98 = vlaneseq
    %v99 = vshrl.u32 %v98, 7
    %v100 = vsub.s32 0, %v99
    %v101 = vrot.slane %v96, %v100
    %v102 = vlaneseq
    %v103 = vshrl.u32 %v102, 7
    %v104 = vsub.s32 1, %v103
    %v105 = vrot.slane %v96, %v104
    %108 = vmatprep.subr.mxu0 %v65
    %109 = vmatpush1.msra.mxu0 %v64
    %110 = vmatprep.subr.mxu0 %v67
    %111 = vmatpush1.msra.mxu0 %v66
    %112 = vmatprep.subr.mxu0 %v69
    %113 = vmatpush1.msra.mxu0 %v68
    %114 = vmatprep.subr.mxu0 %v71
    %115 = vmatpush1.msra.mxu0 %v70
    %116 = vmatprep.subr.mxu0 %v73
    %117 = vmatpush1.msra.mxu0 %v72
    %118 = vmatprep.subr.mxu0 %v75
    %119 = vmatpush1.msra.mxu0 %v74
    %120 = vmatprep.subr.mxu0 %v77
    %121 = vmatpush1.msra.mxu0 %v76
    %122 = vmatprep.subr.mxu0 %v79
    %123 = vmatpush1.msra.mxu0 %v78
    %124 = vmatprep.subr.mxu0 %v81
    %125 = vmatpush1.msra.mxu0 %v80
    %126 = vmatprep.subr.mxu0 %v83
    %127 = vmatpush1.msra.mxu0 %v82
    %128 = vmatprep.subr.mxu0 %v85
    %129 = vmatpush1.msra.mxu0 %v84
    %130 = vmatprep.subr.mxu0 %v87
    %131 = vmatpush1.msra.mxu0 %v86
    %132 = vmatprep.subr.mxu0 %v89
    %133 = vmatpush1.msra.mxu0 %v88
    %134 = vmatprep.subr.mxu0 %v91
    %135 = vmatpush1.msra.mxu0 %v90
    %136 = vmatprep.subr.mxu0 %v93
    %137 = vmatpush1.msra.mxu0 %v92
    %138 = vmatprep.subr.mxu0 %v95
    %139 = vmatpush1.msra.mxu0 %v94
    %140 = vmatprep.subr.mxu0 0.0
    %141 = vmatpush1.msra.mxu0 0.0
    %142 = vmatprep.subr.mxu0 0.0
    %143 = vmatpush1.msra.mxu0 0.0
    %144 = vmatprep.subr.mxu0 0.0
    %145 = vmatpush1.msra.mxu0 0.0
    %146 = vmatprep.subr.mxu0 0.0
    %147 = vmatpush1.msra.mxu0 0.0
    %148 = vmatprep.subr.mxu0 0.0
    %149 = vmatpush1.msra.mxu0 0.0
    %150 = vmatprep.subr.mxu0 0.0
    %151 = vmatpush1.msra.mxu0 0.0
    %152 = vmatprep.subr.mxu0 0.0
    %153 = vmatpush1.msra.mxu0 0.0
    %154 = vmatprep.subr.mxu0 0.0
    %155 = vmatpush1.msra.mxu0 0.0
    %156 = vmatprep.subr.mxu0 0.0
    %157 = vmatpush1.msra.mxu0 0.0
    %158 = vmatprep.subr.mxu0 0.0
    %159 = vmatpush1.msra.mxu0 0.0
    %160 = vmatprep.subr.mxu0 0.0
    %161 = vmatpush1.msra.mxu0 0.0
    %162 = vmatprep.subr.mxu0 0.0
    %163 = vmatpush1.msra.mxu0 0.0
    %164 = vmatprep.subr.mxu0 0.0
    %165 = vmatpush1.msra.mxu0 0.0
    %166 = vmatprep.subr.mxu0 0.0
    %167 = vmatpush1.msra.mxu0 0.0
    %168 = vmatprep.subr.mxu0 0.0
    %169 = vmatpush1.msra.mxu0 0.0
    %170 = vmatprep.subr.mxu0 0.0
    %171 = vmatpush1.msra.mxu0 0.0
    %172 = vmatprep.mubr.f32.mxu0 0.0
    %173 = vmatmul.mubr.f32.gmra.mrb[0].mxu0 %v62
    %v174 = vpop.f32.mrb[0].mxu0
    %v175 = vadd.f32 %v101, %v174
    %v176 = vpop.f32.mrb[0].mxu0
    %v177 = vadd.f32 %v105, %v176
    %178 = vmatprep.mubr.f32.mxu0 0.0
    %179 = vmatmul.mubr.f32.gmra.mrb[0].mxu0 %v63
    %v180 = vpop.f32.mrb[0].mxu0
    %v181 = vadd.f32 %v101, %v180
    %v182 = vpop.f32.mrb[0].mxu0
    %v183 = vadd.f32 %v105, %v182
    %184 = vdwg.mxu0
    %v185 = vmul.f32 %v175, 0.5
    %v186 = vmul.f32 %v177, 0.5
    %v187 = vmul.f32 %v181, 0.5
    %v188 = vmul.f32 %v183, 0.5
    %v189 = vmul.f32 %v175, 0.044715
    %v190 = vmul.f32 %v177, 0.044715
    %v191 = vmul.f32 %v181, 0.044715
    %v192 = vmul.f32 %v183, 0.044715
    %v193 = vmul.f32 %v189, %v175
    %v194 = vmul.f32 %v190, %v177
    %v195 = vmul.f32 %v191, %v181
    %v196 = vmul.f32 %v192, %v183
    %v197 = vmul.f32 %v193, %v175
    %v198 = vmul.f32 %v194, %v177
    %v199 = vmul.f32 %v195, %v181
    %v200 = vmul.f32 %v196, %v183
    %v201 = vadd.f32 %v175, %v197
    %v202 = vadd.f32 %v177, %v198
    %v203 = vadd.f32 %v181, %v199
    %v204 = vadd.f32 %v183, %v200
    %v205 = vmul.f32 %v201, 0.7978846
    %v206 = vmul.f32 %v202, 0.7978846
    %v207 = vmul.f32 %v203, 0.7978846
    %v208 = vmul.f32 %v204, 0.7978846
    %v209 = vtanh.pop %v205
    %v210 = vtanh.pop %v206
    %v211 = vtanh.pop %v207
    %v212 = vtanh.pop %v208
    %v213 = vadd.f32 %v209, 1.0
    %v214 = vadd.f32 %v210, 1.0
    %v215 = vadd.f32 %v211, 1.0
    %v216 = vadd.f32 %v212, 1.0
    %v217 = vmul.f32 %v185, %v213
    %v218 = vmul.f32 %v186, %v214
    %v219 = vmul.f32 %v187, %v215
    %v220 = vmul.f32 %v188, %v216
    %v221 = vld [vmem:[#allocation7] sm:$0xff]
    %v222 = vld [vmem:[#allocation7 + $0x8] sm:$0xff]
    %v223 = vld [vmem:[#allocation7 + $0x10] sm:$0xff]
    %v224 = vld [vmem:[#allocation7 + $0x18] sm:$0xff]
    %v225 = vld [vmem:[#allocation7 + $0x20] sm:$0xff]
    %v226 = vld [vmem:[#allocation7 + $0x28] sm:$0xff]
    %v227 = vld [vmem:[#allocation7 + $0x30] sm:$0xff]
    %v228 = vld [vmem:[#allocation7 + $0x38] sm:$0xff]
    %v229 = vld [vmem:[#allocation7 + $0x40] sm:$0xff]
    %v230 = vld [vmem:[#allocation7 + $0x48] sm:$0xff]
    %v231 = vld [vmem:[#allocation7 + $0x50] sm:$0xff]
    %v232 = vld [vmem:[#allocation7 + $0x58] sm:$0xff]
    %v233 = vld [vmem:[#allocation7 + $0x60] sm:$0xff]
    %v234 = vld [vmem:[#allocation7 + $0x68] sm:$0xff]
    %v235 = vld [vmem:[#allocation7 + $0x70] sm:$0xff]
    %v236 = vld [vmem:[#allocation7 + $0x78] sm:$0xff]
    %v237 = vld [vmem:[#allocation7 + $0x80] sm:$0xff]
    %v238 = vld [vmem:[#allocation7 + $0x88] sm:$0xff]
    %v239 = vld [vmem:[#allocation7 + $0x90] sm:$0xff]
    %v240 = vld [vmem:[#allocation7 + $0x98] sm:$0xff]
    %v241 = vld [vmem:[#allocation7 + $0xa0] sm:$0xff]
    %v242 = vld [vmem:[#allocation7 + $0xa8] sm:$0xff]
    %v243 = vld [vmem:[#allocation7 + $0xb0] sm:$0xff]
    %v244 = vld [vmem:[#allocation7 + $0xb8] sm:$0xff]
    %v245 = vld [vmem:[#allocation7 + $0xc0] sm:$0xff]
    %v246 = vld [vmem:[#allocation7 + $0xc8] sm:$0xff]
    %v247 = vld [vmem:[#allocation7 + $0xd0] sm:$0xff]
    %v248 = vld [vmem:[#allocation7 + $0xd8] sm:$0xff]
    %v249 = vld [vmem:[#allocation7 + $0xe0] sm:$0xff]
    %v250 = vld [vmem:[#allocation7 + $0xe8] sm:$0xff]
    %v251 = vld [vmem:[#allocation7 + $0xf0] sm:$0xff]
    %v252 = vld [vmem:[#allocation7 + $0xf8] sm:$0xff]
    %v253 = vld [vmem:[%s4] sm:$0x1]
    %v255 = vlaneseq
    %v256 = vshrl.u32 %v255, 7
    %v257 = vsub.s32 0, %v256
    %v258 = vrot.slane %v253, %v257
    %260 = vmatprep.subr.mxu0 0.0
    %261 = vmatpush1.msra.mxu0 %v221
    %262 = vmatprep.subr.mxu0 0.0
    %263 = vmatpush1.msra.mxu0 %v222
    %264 = vmatprep.subr.mxu0 0.0
    %265 = vmatpush1.msra.mxu0 %v223
    %266 = vmatprep.subr.mxu0 0.0
    %267 = vmatpush1.msra.mxu0 %v224
    %268 = vmatprep.subr.mxu0 0.0
    %269 = vmatpush1.msra.mxu0 %v225
    %270 = vmatprep.subr.mxu0 0.0
    %271 = vmatpush1.msra.mxu0 %v226
    %272 = vmatprep.subr.mxu0 0.0
    %273 = vmatpush1.msra.mxu0 %v227
    %274 = vmatprep.subr.mxu0 0.0
    %275 = vmatpush1.msra.mxu0 %v228
    %276 = vmatprep.subr.mxu0 0.0
    %277 = vmatpush1.msra.mxu0 %v229
    %278 = vmatprep.subr.mxu0 0.0
    %279 = vmatpush1.msra.mxu0 %v230
    %280 = vmatprep.subr.mxu0 0.0
    %281 = vmatpush1.msra.mxu0 %v231
    %282 = vmatprep.subr.mxu0 0.0
    %283 = vmatpush1.msra.mxu0 %v232
    %284 = vmatprep.subr.mxu0 0.0
    %285 = vmatpush1.msra.mxu0 %v233
    %286 = vmatprep.subr.mxu0 0.0
    %287 = vmatpush1.msra.mxu0 %v234
    %288 = vmatprep.subr.mxu0 0.0
    %289 = vmatpush1.msra.mxu0 %v235
    %290 = vmatprep.subr.mxu0 0.0
    %291 = vmatpush1.msra.mxu0 %v236
    %292 = vmatprep.subr.mxu0 0.0
    %293 = vmatpush1.msra.mxu0 %v237
    %294 = vmatprep.subr.mxu0 0.0
    %295 = vmatpush1.msra.mxu0 %v238
    %296 = vmatprep.subr.mxu0 0.0
    %297 = vmatpush1.msra.mxu0 %v239
    %298 = vmatprep.subr.mxu0 0.0
    %299 = vmatpush1.msra.mxu0 %v240
    %300 = vmatprep.subr.mxu0 0.0
    %301 = vmatpush1.msra.mxu0 %v241
    %302 = vmatprep.subr.mxu0 0.0
    %303 = vmatpush1.msra.mxu0 %v242
    %304 = vmatprep.subr.mxu0 0.0
    %305 = vmatpush1.msra.mxu0 %v243
    %306 = vmatprep.subr.mxu0 0.0
    %307 = vmatpush1.msra.mxu0 %v244
    %308 = vmatprep.subr.mxu0 0.0
    %309 = vmatpush1.msra.mxu0 %v245
    %310 = vmatprep.subr.mxu0 0.0
    %311 = vmatpush1.msra.mxu0 %v246
    %312 = vmatprep.subr.mxu0 0.0
    %313 = vmatpush1.msra.mxu0 %v247
    %314 = vmatprep.subr.mxu0 0.0
    %315 = vmatpush1.msra.mxu0 %v248
    %316 = vmatprep.subr.mxu0 0.0
    %317 = vmatpush1.msra.mxu0 %v249
    %318 = vmatprep.subr.mxu0 0.0
    %319 = vmatpush1.msra.mxu0 %v250
    %320 = vmatprep.subr.mxu0 0.0
    %321 = vmatpush1.msra.mxu0 %v251
    %322 = vmatprep.subr.mxu0 0.0
    %323 = vmatpush1.msra.mxu0 %v252
    %324 = vmatprep.mubr.f32.mxu0 %v218
    %325 = vmatmul.mubr.f32.gmra.mrb[0].mxu0 %v217
    %v326 = vpop.f32.mrb[0].mxu0
    %v327 = vadd.f32 %v258, %v326
    %v328 = vpop.f32.mrb[0].mxu0
    %329 = vmatprep.mubr.f32.mxu0 %v220
    %330 = vmatmul.mubr.f32.gmra.mrb[0].mxu0 %v219
    %v331 = vpop.f32.mrb[0].mxu0
    %v332 = vadd.f32 %v258, %v331
    %v333 = vpop.f32.mrb[0].mxu0
    %334 = vdwg.mxu0
    %335 = vst [vmem:[#allocation8] sm:$0xff] %v327
    %336 = vst [vmem:[#allocation8 + $0x8] sm:$0xff] %v332
    // Predicated region
    $region34: #{tpu_custom_call.1} parent=1 // pred_check
      _
    $region35: #{tpu_custom_call.1} parent=1 // pred_check_branch
      %338 = sbr.rel (0) target = $region37
    $region36: #{tpu_custom_call.1} parent=1 // pred_region
      %s340 = ssub.s32 256, 256
      %341 = vsyncadd [#allocation4], %s340
      %s342 = sshll.u32 [#allocation8], 4
      %s343 = int_to_ptr.vmem [resolvable:$true] %s342
      %348 = dma.vmem_to_hbm [thread:$0]  %s343, 256, %s5, [#allocation4], 128, 128, 8
    $region37: #{tpu_custom_call.1} parent=1 // pred_fallthru
      _
    // Predicated region
    $region38: #{tpu_custom_call.1} parent=1 // pred_check
      _
    $region39: #{tpu_custom_call.1} parent=1 // pred_check_branch
      %350 = sbr.rel (0) target = $region41
    $region40: #{tpu_custom_call.1} parent=1 // pred_region
      %351 = dma.done [#allocation4], 256
    $region41: #{tpu_custom_call.1} parent=1 // pred_fallthru
      _
    %352 = vsyncpa [#allocation3], 1
    %353 = vsyncpa [#allocation6], 1
    %354 = vsyncpa [#allocation4], 1

</llo_original>
